<compile_context>
chip_gen: v7x
topology: tpu7x:2x2x1
jax: 0.10.0
libtpu: 0.0.40
codegen_flags: <defaults>
</compile_context>

<pallas_src>
import jax
import jax.numpy as jnp
from jax.experimental import pallas as pl


def ote_decoder_kernel(x_ref, avg_ref, pos_ref,
                       w1_ref, b1_ref,
                       w2_ref, b2_ref,
                       w34_ref, b34_ref,
                       out_ref):
    """Full-array VMEM blocks, single invocation (grid-less).

    x_ref   : (B*T, D)    encoder features, batch+seq flattened
    avg_ref : (B*L, B*T)  row b*L+l holds 1/T in batch-b columns, so
                          avg @ x == mean_T(x[b]) repeated L times per batch
    pos_ref : (B*L, D)    pos_embed tiled over batch
    w1, w2  : (D, D)      b1, b2 : (1, D)
    w34     : (D, Cp)     = W3 @ Wfc, zero-padded to Cp (lane-dense) columns
    b34     : (1, Cp)     = b3 @ Wfc + bfc, zero-padded
    out_ref : (B*L, Cp)
    """
    # feat (mean over T) broadcast to every output position: one MXU matmul.
    featr = jnp.dot(avg_ref[...], x_ref[...],
                    preferred_element_type=jnp.float32)               # (BL, D)

    # fc1(feat) + pos_embed
    h1 = (jnp.dot(featr, w1_ref[...], preferred_element_type=jnp.float32)
          + b1_ref[...] + pos_ref[...])                               # (BL, D)

    # fc2(tanh(h1)) then softmax over the channel dim
    h2 = (jnp.dot(jnp.tanh(h1), w2_ref[...],
                  preferred_element_type=jnp.float32) + b2_ref[...])  # (BL, D)
    m = jnp.max(h2, axis=-1, keepdims=True)
    e = jnp.exp(h2 - m)
    s = jnp.sum(e, axis=-1, keepdims=True)
    attn = e * pl.reciprocal(s, approx=True)                          # EUP slot

    # fc(fc3(feat * attn)) with fc3/fc pre-fused into (W34, b34)
    z = featr * attn
    out_ref[...] = (jnp.dot(z, w34_ref[...],
                            preferred_element_type=jnp.float32) + b34_ref[...])


@jax.jit
def ote_decoder_forward(x, params):
    """x: (B, T, D) float32; params: dict from init_params. Returns (B, L, C)."""
    B, T, D = x.shape
    pos = params["pos_embed"]                         # (L, D)
    L = pos.shape[0]
    C = params["fc_w"].shape[1]
    BT, BL = B * T, B * L
    Cp = max(128, ((C + 127) // 128) * 128)           # lane-dense classifier width

    # --- parameter / layout prep (affine rewrites only, no semantic change) ---
    hp = jax.lax.Precision.HIGHEST
    w34 = jnp.dot(params["fc3_w"], params["fc_w"], precision=hp)            # (D, C)
    b34 = jnp.dot(params["fc3_b"], params["fc_w"], precision=hp) + params["fc_b"]
    w34p = jnp.pad(w34, ((0, 0), (0, Cp - C)))
    b34p = jnp.pad(b34, ((0, 0), (0, Cp - C)))
    pos_t = jnp.tile(pos, (B, 1))                                           # (BL, D)
    # avg[b*L + l, b*T + t] = 1/T
    avg = ((jnp.arange(BL)[:, None] // L) == (jnp.arange(BT)[None, :] // T))
    avg = avg.astype(jnp.float32) / T                                       # (BL, BT)
    x_flat = x.reshape(BT, D)

    full = lambda shape: pl.BlockSpec(shape, lambda: (0,) * len(shape))

    flops = 2 * BL * BT * D + 2 * 2 * BL * D * D + 2 * BL * D * Cp
    trans = 2 * BL * D + BL
    nbytes = 4 * (BT * D + BL * BT + BL * D + 2 * D * D + 2 * D
                  + D * Cp + Cp + BL * Cp)

    out_flat = pl.pallas_call(
        ote_decoder_kernel,
        out_shape=jax.ShapeDtypeStruct((BL, Cp), jnp.float32),
        in_specs=[
            full((BT, D)),                   # x (flattened)
            full((BL, BT)),                  # averaging / replication matrix
            full((BL, D)),                   # pos_embed tiled over batch
            full((D, D)), full((1, D)),      # fc1
            full((D, D)), full((1, D)),      # fc2
            full((D, Cp)), full((1, Cp)),    # fused fc3·fc (lane-padded)
        ],
        out_specs=full((BL, Cp)),
        cost_estimate=pl.CostEstimate(
            flops=flops, transcendentals=trans, bytes_accessed=nbytes),
    )(x_flat, avg, pos_t,
      params["fc1_w"], params["fc1_b"],
      params["fc2_w"], params["fc2_b"],
      w34p, b34p)

    return out_flat[:, :C].reshape(B, L, C)


def init_params(key, dim, out_channels, max_len):
    """Deterministic synthetic init (trunc_normal(std=0.02) ~ normal*0.02, zero bias)."""
    L = max_len + 1
    C = out_channels - 2
    ks = jax.random.split(key, 5)
    std = 0.02
    # Linear weights stored already transposed to (in, out) layout.
    return {
        "pos_embed": jax.random.normal(ks[0], (L, dim), jnp.float32) * std,
        "fc1_w": jax.random.normal(ks[1], (dim, dim), jnp.float32) * std,
        "fc1_b": jnp.zeros((1, dim), jnp.float32),
        "fc2_w": jax.random.normal(ks[2], (dim, dim), jnp.float32) * std,
        "fc2_b": jnp.zeros((1, dim), jnp.float32),
        "fc3_w": jax.random.normal(ks[3], (dim, dim), jnp.float32) * std,
        "fc3_b": jnp.zeros((1, dim), jnp.float32),
        "fc_w": jax.random.normal(ks[4], (dim, C), jnp.float32) * std,
        "fc_b": jnp.zeros((1, C), jnp.float32),
    }


def ote_decoder_reference(x, p):
    """Pure-JAX reference mirroring the PyTorch forward (eval mode, ar=False), unfused."""
    feat = jnp.mean(x, axis=1, keepdims=True)                       # (B,1,D)
    h1 = feat @ p["fc1_w"] + p["fc1_b"] + p["pos_embed"][None]      # (B,L,D)
    attn = jax.nn.softmax(jnp.tanh(h1) @ p["fc2_w"] + p["fc2_b"], axis=-1)
    y = (feat * attn) @ p["fc3_w"] + p["fc3_b"]
    return y @ p["fc_w"] + p["fc_b"]


if __name__ == "__main__":
    # Small shapes consistent with the module:
    B, T, D = 2, 16, 32         # batch, encoder seq len, in_channels (= dim)
    out_channels = 12           # classifier outputs = out_channels - 2 = 10
    max_len = 25                # L = max_len + 1 = 26

    key = jax.random.PRNGKey(0)
    kx, kp = jax.random.split(key)
    x = jax.random.normal(kx, (B, T, D), jnp.float32)
    params = init_params(kp, D, out_channels, max_len)

    out = ote_decoder_forward(x, params)
    out = jax.block_until_ready(out)

    ref = ote_decoder_reference(x, params)
    assert out.shape == (B, max_len + 1, out_channels - 2)
    assert jnp.allclose(out, ref, atol=1e-5, rtol=1e-5), "mismatch vs reference"

    print("KERNEL_OK")
</pallas_src>

<mosaic_0001>
module attributes {stable_mosaic.version = 11 : i64} {
  func.func @ote_decoder_kernel(%arg0: memref<32x32xf32, #tpu.memory_space<vmem>>, %arg1: memref<52x32xf32, #tpu.memory_space<vmem>>, %arg2: memref<52x32xf32, #tpu.memory_space<vmem>>, %arg3: memref<32x32xf32, #tpu.memory_space<vmem>>, %arg4: memref<1x32xf32, #tpu.memory_space<vmem>>, %arg5: memref<32x32xf32, #tpu.memory_space<vmem>>, %arg6: memref<1x32xf32, #tpu.memory_space<vmem>>, %arg7: memref<32x128xf32, #tpu.memory_space<vmem>>, %arg8: memref<1x128xf32, #tpu.memory_space<vmem>>, %arg9: memref<52x128xf32, #tpu.memory_space<vmem>>) attributes {dimension_semantics = [], scalar_prefetch = 0 : i64, scratch_operands = 0 : i64, tpu.core_type = #tpu.core_type<tc>} {
    %c0 = arith.constant 0 : index
    %c0_0 = arith.constant 0 : index
    %0 = vector.load %arg1[%c0, %c0_0] : memref<52x32xf32, #tpu.memory_space<vmem>>, vector<52x32xf32>
    %c0_1 = arith.constant 0 : index
    %c0_2 = arith.constant 0 : index
    %1 = vector.load %arg0[%c0_1, %c0_2] : memref<32x32xf32, #tpu.memory_space<vmem>>, vector<32x32xf32>
    %cst = arith.constant dense<0.000000e+00> : vector<52x32xf32>
    %2 = tpu.matmul %0, %1, %cst {dimension_numbers = #tpu.dot_dimension_numbers<[1], [0], [0], [1], [0, 0, 1, 1], [], []>} : vector<52x32xf32>, vector<32x32xf32>, vector<52x32xf32> -> vector<52x32xf32>
    %c0_3 = arith.constant 0 : index
    %c0_4 = arith.constant 0 : index
    %3 = vector.load %arg3[%c0_3, %c0_4] : memref<32x32xf32, #tpu.memory_space<vmem>>, vector<32x32xf32>
    %cst_5 = arith.constant dense<0.000000e+00> : vector<52x32xf32>
    %4 = tpu.matmul %2, %3, %cst_5 {dimension_numbers = #tpu.dot_dimension_numbers<[1], [0], [0], [1], [0, 0, 1, 1], [], []>} : vector<52x32xf32>, vector<32x32xf32>, vector<52x32xf32> -> vector<52x32xf32>
    %c0_6 = arith.constant 0 : index
    %c0_7 = arith.constant 0 : index
    %5 = vector.load %arg4[%c0_6, %c0_7] : memref<1x32xf32, #tpu.memory_space<vmem>>, vector<1x32xf32>
    %6 = vector.broadcast %5 : vector<1x32xf32> to vector<52x32xf32>
    %7 = arith.addf %4, %6 : vector<52x32xf32>
    %c0_8 = arith.constant 0 : index
    %c0_9 = arith.constant 0 : index
    %8 = vector.load %arg2[%c0_8, %c0_9] : memref<52x32xf32, #tpu.memory_space<vmem>>, vector<52x32xf32>
    %9 = arith.addf %7, %8 : vector<52x32xf32>
    %10 = math.tanh %9 : vector<52x32xf32>
    %c0_10 = arith.constant 0 : index
    %c0_11 = arith.constant 0 : index
    %11 = vector.load %arg5[%c0_10, %c0_11] : memref<32x32xf32, #tpu.memory_space<vmem>>, vector<32x32xf32>
    %cst_12 = arith.constant dense<0.000000e+00> : vector<52x32xf32>
    %12 = tpu.matmul %10, %11, %cst_12 {dimension_numbers = #tpu.dot_dimension_numbers<[1], [0], [0], [1], [0, 0, 1, 1], [], []>} : vector<52x32xf32>, vector<32x32xf32>, vector<52x32xf32> -> vector<52x32xf32>
    %c0_13 = arith.constant 0 : index
    %c0_14 = arith.constant 0 : index
    %13 = vector.load %arg6[%c0_13, %c0_14] : memref<1x32xf32, #tpu.memory_space<vmem>>, vector<1x32xf32>
    %14 = vector.broadcast %13 : vector<1x32xf32> to vector<52x32xf32>
    %15 = arith.addf %12, %14 : vector<52x32xf32>
    %cst_15 = arith.constant dense<0xFF800000> : vector<52xf32>
    %16 = vector.multi_reduction <maximumf>, %15, %cst_15 [1] : vector<52x32xf32> to vector<52xf32>
    %17 = vector.shape_cast %16 : vector<52xf32> to vector<52x1xf32>
    %18 = vector.broadcast %17 : vector<52x1xf32> to vector<52x32xf32>
    %19 = arith.subf %15, %18 : vector<52x32xf32>
    %20 = math.exp %19 : vector<52x32xf32>
    %cst_16 = arith.constant dense<0.000000e+00> : vector<52xf32>
    %21 = vector.multi_reduction <add>, %20, %cst_16 [1] : vector<52x32xf32> to vector<52xf32>
    %22 = vector.shape_cast %21 : vector<52xf32> to vector<52x1xf32>
    %23 = tpu.reciprocal %22 {approx = true} : vector<52x1xf32> -> vector<52x1xf32>
    %24 = vector.broadcast %23 : vector<52x1xf32> to vector<52x32xf32>
    %25 = arith.mulf %20, %24 : vector<52x32xf32>
    %26 = arith.mulf %2, %25 : vector<52x32xf32>
    %c0_17 = arith.constant 0 : index
    %c0_18 = arith.constant 0 : index
    %27 = vector.load %arg7[%c0_17, %c0_18] : memref<32x128xf32, #tpu.memory_space<vmem>>, vector<32x128xf32>
    %cst_19 = arith.constant dense<0.000000e+00> : vector<52x128xf32>
    %28 = tpu.matmul %26, %27, %cst_19 {dimension_numbers = #tpu.dot_dimension_numbers<[1], [0], [0], [1], [0, 0, 1, 1], [], []>} : vector<52x32xf32>, vector<32x128xf32>, vector<52x128xf32> -> vector<52x128xf32>
    %c0_20 = arith.constant 0 : index
    %c0_21 = arith.constant 0 : index
    %29 = vector.load %arg8[%c0_20, %c0_21] : memref<1x128xf32, #tpu.memory_space<vmem>>, vector<1x128xf32>
    %30 = vector.broadcast %29 : vector<1x128xf32> to vector<52x128xf32>
    %31 = arith.addf %28, %30 : vector<52x128xf32>
    %c0_22 = arith.constant 0 : index
    %c0_23 = arith.constant 0 : index
    %32 = vector.load %arg9[%c0_22, %c0_23] : memref<52x128xf32, #tpu.memory_space<vmem>>, vector<52x128xf32>
    tpu.vector_store %arg9[%c0_22, %c0_23], %31 {strides = array<i32>} : memref<52x128xf32, #tpu.memory_space<vmem>>, vector<52x128xf32>,
    return
  }
}

</mosaic_0001>

<llo_original>
// kernel: tile.9
$region0: #{tile.9}
  %s0 = inlined_call_operand.vmem [shape: f32[2,26,32], index: 0, kind: input, shape index: {}]
  %s1 = inlined_call_operand.vmem [shape: f32[52,32], index: 1, kind: output, shape index: {}]
  $region1: #{tile.9} parent=0
    #allocation0 [shape = 'u8[131072]{0}', space=vmem, size = 0x20000, scoped, tag = 'scoped mem for input reshape']
    %s3 = sshllo.u32 0, 2
    %s4 = smul.addr 2, 31
    %s5 = scalar_lea.vmem %s0, %s4
    %v6 = vld [vmem:[%s5] sm:%s3]
    %s7 = scalar_lea.vmem [#allocation0], 248
    %8 = vst [vmem:[%s7] sm:%s3] %v6
    %s9 = smul.addr 2, 30
    %s10 = scalar_lea.vmem %s0, %s9
    %v11 = vld [vmem:[%s10] sm:%s3]
    %s12 = scalar_lea.vmem [#allocation0], 240
    %13 = vst [vmem:[%s12] sm:%s3] %v11
    %s14 = smul.addr 2, 29
    %s15 = scalar_lea.vmem %s0, %s14
    %v16 = vld [vmem:[%s15] sm:%s3]
    %s17 = scalar_lea.vmem [#allocation0], 232
    %18 = vst [vmem:[%s17] sm:%s3] %v16
    %s19 = smul.addr 2, 28
    %s20 = scalar_lea.vmem %s0, %s19
    %v21 = vld [vmem:[%s20] sm:%s3]
    %s22 = scalar_lea.vmem [#allocation0], 224
    %23 = vst [vmem:[%s22] sm:%s3] %v21
    %s24 = smul.addr 2, 27
    %s25 = scalar_lea.vmem %s0, %s24
    %v26 = vld [vmem:[%s25] sm:%s3]
    %s27 = scalar_lea.vmem [#allocation0], 216
    %28 = vst [vmem:[%s27] sm:%s3] %v26
    %s29 = smul.addr 2, 26
    %s30 = scalar_lea.vmem %s0, %s29
    %v31 = vld [vmem:[%s30] sm:%s3]
    %s32 = scalar_lea.vmem [#allocation0], 208
    %33 = vst [vmem:[%s32] sm:%s3] %v31
    %s34 = smul.addr 2, 25
    %s35 = scalar_lea.vmem %s0, %s34
    %v36 = vld [vmem:[%s35] sm:%s3]
    %s37 = scalar_lea.vmem [#allocation0], 200
    %38 = vst [vmem:[%s37] sm:%s3] %v36
    %s39 = smul.addr 2, 24
    %s40 = scalar_lea.vmem %s0, %s39
    %v41 = vld [vmem:[%s40] sm:%s3]
    %s42 = scalar_lea.vmem [#allocation0], 192
    %43 = vst [vmem:[%s42] sm:%s3] %v41
    %s44 = smul.addr 2, 23
    %s45 = scalar_lea.vmem %s0, %s44
    %v46 = vld [vmem:[%s45] sm:%s3]
    %s47 = scalar_lea.vmem [#allocation0], 184
    %48 = vst [vmem:[%s47] sm:%s3] %v46
    %s49 = smul.addr 2, 22
    %s50 = scalar_lea.vmem %s0, %s49
    %v51 = vld [vmem:[%s50] sm:%s3]
    %s52 = scalar_lea.vmem [#allocation0], 176
    %53 = vst [vmem:[%s52] sm:%s3] %v51
    %s54 = smul.addr 2, 21
    %s55 = scalar_lea.vmem %s0, %s54
    %v56 = vld [vmem:[%s55] sm:%s3]
    %s57 = scalar_lea.vmem [#allocation0], 168
    %58 = vst [vmem:[%s57] sm:%s3] %v56
    %s59 = smul.addr 2, 20
    %s60 = scalar_lea.vmem %s0, %s59
    %v61 = vld [vmem:[%s60] sm:%s3]
    %s62 = scalar_lea.vmem [#allocation0], 160
    %63 = vst [vmem:[%s62] sm:%s3] %v61
    %s64 = smul.addr 2, 19
    %s65 = scalar_lea.vmem %s0, %s64
    %v66 = vld [vmem:[%s65] sm:%s3]
    %s67 = scalar_lea.vmem [#allocation0], 152
    %68 = vst [vmem:[%s67] sm:%s3] %v66
    %s69 = smul.addr 2, 18
    %s70 = scalar_lea.vmem %s0, %s69
    %v71 = vld [vmem:[%s70] sm:%s3]
    %s72 = scalar_lea.vmem [#allocation0], 144
    %73 = vst [vmem:[%s72] sm:%s3] %v71
    %s74 = smul.addr 2, 17
    %s75 = scalar_lea.vmem %s0, %s74
    %v76 = vld [vmem:[%s75] sm:%s3]
    %s77 = scalar_lea.vmem [#allocation0], 136
    %78 = vst [vmem:[%s77] sm:%s3] %v76
    %s79 = smul.addr 2, 16
    %s80 = scalar_lea.vmem %s0, %s79
    %v81 = vld [vmem:[%s80] sm:%s3]
    %s82 = scalar_lea.vmem [#allocation0], 128
    %83 = vst [vmem:[%s82] sm:%s3] %v81
    %s84 = smul.addr 2, 15
    %s85 = scalar_lea.vmem %s0, %s84
    %v86 = vld [vmem:[%s85] sm:%s3]
    %s87 = scalar_lea.vmem [#allocation0], 120
    %88 = vst [vmem:[%s87] sm:%s3] %v86
    %s89 = smul.addr 2, 14
    %s90 = scalar_lea.vmem %s0, %s89
    %v91 = vld [vmem:[%s90] sm:%s3]
    %s92 = scalar_lea.vmem [#allocation0], 112
    %93 = vst [vmem:[%s92] sm:%s3] %v91
    %s94 = smul.addr 2, 13
    %s95 = scalar_lea.vmem %s0, %s94
    %v96 = vld [vmem:[%s95] sm:%s3]
    %s97 = scalar_lea.vmem [#allocation0], 104
    %98 = vst [vmem:[%s97] sm:%s3] %v96
    %s99 = smul.addr 2, 12
    %s100 = scalar_lea.vmem %s0, %s99
    %v101 = vld [vmem:[%s100] sm:%s3]
    %s102 = scalar_lea.vmem [#allocation0], 96
    %103 = vst [vmem:[%s102] sm:%s3] %v101
    %s104 = smul.addr 2, 11
    %s105 = scalar_lea.vmem %s0, %s104
    %v106 = vld [vmem:[%s105] sm:%s3]
    %s107 = scalar_lea.vmem [#allocation0], 88
    %108 = vst [vmem:[%s107] sm:%s3] %v106
    %s109 = smul.addr 2, 10
    %s110 = scalar_lea.vmem %s0, %s109
    %v111 = vld [vmem:[%s110] sm:%s3]
    %s112 = scalar_lea.vmem [#allocation0], 80
    %113 = vst [vmem:[%s112] sm:%s3] %v111
    %s114 = smul.addr 2, 9
    %s115 = scalar_lea.vmem %s0, %s114
    %v116 = vld [vmem:[%s115] sm:%s3]
    %s117 = scalar_lea.vmem [#allocation0], 72
    %118 = vst [vmem:[%s117] sm:%s3] %v116
    %s119 = smul.addr 2, 8
    %s120 = scalar_lea.vmem %s0, %s119
    %v121 = vld [vmem:[%s120] sm:%s3]
    %s122 = scalar_lea.vmem [#allocation0], 64
    %123 = vst [vmem:[%s122] sm:%s3] %v121
    %s124 = smul.addr 2, 7
    %s125 = scalar_lea.vmem %s0, %s124
    %v126 = vld [vmem:[%s125] sm:%s3]
    %s127 = scalar_lea.vmem [#allocation0], 56
    %128 = vst [vmem:[%s127] sm:%s3] %v126
    %s129 = smul.addr 2, 6
    %s130 = scalar_lea.vmem %s0, %s129
    %v131 = vld [vmem:[%s130] sm:%s3]
    %s132 = scalar_lea.vmem [#allocation0], 48
    %133 = vst [vmem:[%s132] sm:%s3] %v131
    %s134 = smul.addr 2, 5
    %s135 = scalar_lea.vmem %s0, %s134
    %v136 = vld [vmem:[%s135] sm:%s3]
    %s137 = scalar_lea.vmem [#allocation0], 40
    %138 = vst [vmem:[%s137] sm:%s3] %v136
    %s139 = smul.addr 2, 4
    %s140 = scalar_lea.vmem %s0, %s139
    %v141 = vld [vmem:[%s140] sm:%s3]
    %s142 = scalar_lea.vmem [#allocation0], 32
    %143 = vst [vmem:[%s142] sm:%s3] %v141
    %s144 = smul.addr 2, 3
    %s145 = scalar_lea.vmem %s0, %s144
    %v146 = vld [vmem:[%s145] sm:%s3]
    %s147 = scalar_lea.vmem [#allocation0], 24
    %148 = vst [vmem:[%s147] sm:%s3] %v146
    %s149 = smul.addr 2, 2
    %s150 = scalar_lea.vmem %s0, %s149
    %v151 = vld [vmem:[%s150] sm:%s3]
    %s152 = scalar_lea.vmem [#allocation0], 16
    %153 = vst [vmem:[%s152] sm:%s3] %v151
    %s154 = scalar_lea.vmem %s0, 2
    %v155 = vld [vmem:[%s154] sm:%s3]
    %s156 = scalar_lea.vmem [#allocation0], 8
    %157 = vst [vmem:[%s156] sm:%s3] %v155
    %v158 = vld [vmem:[%s0] sm:%s3]
    %159 = vst [vmem:[#allocation0] sm:%s3] %v158
    %v160 = vld [vmem:[#allocation0] ss:$8 sm:$0xf]
    %v161 = vld [vmem:[#allocation0] ss:$8 sm:$0xf0]
    %vm162 = vcmask 1047556
    %v163 = vsel %vm162, %v161, %v160
    %vm164 = vcmask 211968
    %165 = vst.msk [vmem:[%s1] sm:$0xff] %vm164, %v163
    %s166 = scalar_lea.vmem [#allocation0], 64
    %v167 = vld [vmem:[%s166] ss:$8 sm:$0xf]
    %s168 = scalar_lea.vmem [#allocation0], 64
    %v169 = vld [vmem:[%s168] ss:$8 sm:$0xf0]
    %vm170 = vcmask 1047556
    %v171 = vsel %vm170, %v169, %v167
    %vm172 = vcmask 211968
    %s173 = scalar_lea.vmem %s1, 8
    %174 = vst.msk [vmem:[%s173] sm:$0xff] %vm172, %v171
    %s175 = scalar_lea.vmem [#allocation0], 128
    %v176 = vld [vmem:[%s175] ss:$8 sm:$0xf]
    %s177 = scalar_lea.vmem [#allocation0], 128
    %v178 = vld [vmem:[%s177] ss:$8 sm:$0xf0]
    %vm179 = vcmask 1047556
    %v180 = vsel %vm179, %v178, %v176
    %vm181 = vcmask 211968
    %s182 = scalar_lea.vmem %s1, 16
    %183 = vst.msk [vmem:[%s182] sm:$0xff] %vm181, %v180
    %s184 = scalar_lea.vmem [#allocation0], 192
    %v185 = vld [vmem:[%s184] ss:$8 sm:$0xf]
    %s186 = scalar_lea.vmem [#allocation0], 192
    %v187 = vld [vmem:[%s186] ss:$8 sm:$0xf0]
    %vm188 = vcmask 1047556
    %v189 = vsel %vm188, %v187, %v185
    %vm190 = vcmask 211968
    %s191 = scalar_lea.vmem %s1, 24
    %192 = vst.msk [vmem:[%s191] sm:$0xff] %vm190, %v189
    %s193 = scalar_lea.vmem [#allocation0], 1
    %v194 = vld [vmem:[%s193] ss:$8 sm:$0xf]
    %s195 = scalar_lea.vmem [#allocation0], 1
    %v196 = vld [vmem:[%s195] ss:$8 sm:$0xf0]
    %vm197 = vcmask 1047556
    %v198 = vsel %vm197, %v196, %v194
    %199 = vrot.lane.b32.xlu0 %v198, 26
    %v200 = vpop.permute.xlu0 %199
    %vm201 = vcmask 425168
    %202 = vst.msk [vmem:[%s1] sm:$0xff] %vm201, %v200
    %s203 = scalar_lea.vmem [#allocation0], 65
    %v204 = vld [vmem:[%s203] ss:$8 sm:$0xf]
    %s205 = scalar_lea.vmem [#allocation0], 65
    %v206 = vld [vmem:[%s205] ss:$8 sm:$0xf0]
    %vm207 = vcmask 1047556
    %v208 = vsel %vm207, %v206, %v204
    %209 = vrot.lane.b32.xlu0 %v208, 26
    %v210 = vpop.permute.xlu0 %209
    %vm211 = vcmask 425168
    %s212 = scalar_lea.vmem %s1, 8
    %213 = vst.msk [vmem:[%s212] sm:$0xff] %vm211, %v210
    %s214 = scalar_lea.vmem [#allocation0], 129
    %v215 = vld [vmem:[%s214] ss:$8 sm:$0xf]
    %s216 = scalar_lea.vmem [#allocation0], 129
    %v217 = vld [vmem:[%s216] ss:$8 sm:$0xf0]
    %vm218 = vcmask 1047556
    %v219 = vsel %vm218, %v217, %v215
    %220 = vrot.lane.b32.xlu0 %v219, 26
    %v221 = vpop.permute.xlu0 %220
    %vm222 = vcmask 425168
    %s223 = scalar_lea.vmem %s1, 16
    %224 = vst.msk [vmem:[%s223] sm:$0xff] %vm222, %v221
    %s225 = scalar_lea.vmem [#allocation0], 193
    %v226 = vld [vmem:[%s225] ss:$8 sm:$0xf]
    %s227 = scalar_lea.vmem [#allocation0], 193
    %v228 = vld [vmem:[%s227] ss:$8 sm:$0xf0]
    %vm229 = vcmask 1047556
    %v230 = vsel %vm229, %v228, %v226
    %231 = vrot.lane.b32.xlu0 %v230, 26
    %v232 = vpop.permute.xlu0 %231
    %vm233 = vcmask 425168
    %s234 = scalar_lea.vmem %s1, 24
    %235 = vst.msk [vmem:[%s234] sm:$0xff] %vm233, %v232

// kernel: ote_decoder_forward.1
$region0: #{ote_decoder_forward.1}
  #allocation0 [shape = 'u32[]', space=smem, size = 0x4, offset = 0x4, fixed_abs, tag = 'smem constant byte address 0x4 - core index']
  #allocation1 [shape = 'u32[144,128]{1,0:T(1,128)}', space=vmem, size = 0x12000, scoped, tag = 'internal scratch']
  %s0 = inlined_call_operand.vmem [shape: f32[32,32], index: 0, kind: input, shape index: {}]
  %s1 = inlined_call_operand.vmem [shape: f32[52,32], index: 1, kind: input, shape index: {}]
  %s2 = inlined_call_operand.vmem [shape: f32[52,32], index: 2, kind: input, shape index: {}]
  %s3 = inlined_call_operand.vmem [shape: f32[32,32], index: 3, kind: input, shape index: {}]
  %s4 = inlined_call_operand.vmem [shape: f32[1,32], index: 4, kind: input, shape index: {}]
  %s5 = inlined_call_operand.vmem [shape: f32[32,32], index: 5, kind: input, shape index: {}]
  %s6 = inlined_call_operand.vmem [shape: f32[1,32], index: 6, kind: input, shape index: {}]
  %s7 = inlined_call_operand.vmem [shape: f32[32,128], index: 7, kind: input, shape index: {}]
  %s8 = inlined_call_operand.vmem [shape: f32[1,128], index: 8, kind: input, shape index: {}]
  %s9 = inlined_call_operand.vmem [shape: f32[52,128], index: 9, kind: output, shape index: {}]
  %s10 = sld [smem:[#allocation0]]
  $region46: #{ote_decoder_forward.1} parent=0
    _
  %s12 = ssub.s32 1, %s10
  %s13 = scalar_select 0, %s12, %s10
  // Predicated region
  $region2: #{ote_decoder_forward.1} parent=0 // pred_check
    _
  $region3: #{ote_decoder_forward.1} parent=0 // pred_check_branch
    %15 = sbr.rel (0) target = $region5
  $region4: #{ote_decoder_forward.1} parent=0 // pred_region
    _
  $region5: #{ote_decoder_forward.1} parent=0 // pred_fallthru
    _
  // Predicated region
  $region6: #{ote_decoder_forward.1} parent=0 // pred_check
    _
  $region7: #{ote_decoder_forward.1} parent=0 // pred_check_branch
    %17 = sbr.rel (0) target = $region9
  $region8: #{ote_decoder_forward.1} parent=0 // pred_region
    _
  $region9: #{ote_decoder_forward.1} parent=0 // pred_fallthru
    _
  // Predicated region
  $region10: #{ote_decoder_forward.1} parent=0 // pred_check
    _
  $region11: #{ote_decoder_forward.1} parent=0 // pred_check_branch
    %19 = sbr.rel (0) target = $region13
  $region12: #{ote_decoder_forward.1} parent=0 // pred_region
    _
  $region13: #{ote_decoder_forward.1} parent=0 // pred_fallthru
    _
  // Predicated region
  $region14: #{ote_decoder_forward.1} parent=0 // pred_check
    _
  $region15: #{ote_decoder_forward.1} parent=0 // pred_check_branch
    %21 = sbr.rel (0) target = $region17
  $region16: #{ote_decoder_forward.1} parent=0 // pred_region
    _
  $region17: #{ote_decoder_forward.1} parent=0 // pred_fallthru
    _
  // Predicated region
  $region18: #{ote_decoder_forward.1} parent=0 // pred_check
    _
  $region19: #{ote_decoder_forward.1} parent=0 // pred_check_branch
    %23 = sbr.rel (0) target = $region21
  $region20: #{ote_decoder_forward.1} parent=0 // pred_region
    _
  $region21: #{ote_decoder_forward.1} parent=0 // pred_fallthru
    _
  // Predicated region
  $region22: #{ote_decoder_forward.1} parent=0 // pred_check
    _
  $region23: #{ote_decoder_forward.1} parent=0 // pred_check_branch
    %25 = sbr.rel (0) target = $region25
  $region24: #{ote_decoder_forward.1} parent=0 // pred_region
    _
  $region25: #{ote_decoder_forward.1} parent=0 // pred_fallthru
    _
  // Predicated region
  $region26: #{ote_decoder_forward.1} parent=0 // pred_check
    _
  $region27: #{ote_decoder_forward.1} parent=0 // pred_check_branch
    %27 = sbr.rel (0) target = $region29
  $region28: #{ote_decoder_forward.1} parent=0 // pred_region
    _
  $region29: #{ote_decoder_forward.1} parent=0 // pred_fallthru
    _
  // Predicated region
  $region30: #{ote_decoder_forward.1} parent=0 // pred_check
    _
  $region31: #{ote_decoder_forward.1} parent=0 // pred_check_branch
    %29 = sbr.rel (0) target = $region33
  $region32: #{ote_decoder_forward.1} parent=0 // pred_region
    _
  $region33: #{ote_decoder_forward.1} parent=0 // pred_fallthru
    _
  // Predicated region
  $region34: #{ote_decoder_forward.1} parent=0 // pred_check
    _
  $region35: #{ote_decoder_forward.1} parent=0 // pred_check_branch
    %31 = sbr.rel (0) target = $region37
  $region36: #{ote_decoder_forward.1} parent=0 // pred_region
    _
  $region37: #{ote_decoder_forward.1} parent=0 // pred_fallthru
    _
  %v32 = vld [vmem:[%s1] sm:$0xff]
  %v33 = vld [vmem:[%s1 + $0x8] sm:$0xff]
  %v34 = vld [vmem:[%s1 + $0x10] sm:$0xff]
  %v35 = vld [vmem:[%s1 + $0x18] sm:$0xff]
  %v36 = vld [vmem:[%s1 + $0x20] sm:$0xff]
  %v37 = vld [vmem:[%s1 + $0x28] sm:$0xff]
  %v38 = vld [vmem:[%s1 + $0x30] sm:$0xf]
  %v39 = vld [vmem:[%s0] sm:$0xff]
  %v40 = vld [vmem:[%s0 + $0x8] sm:$0xff]
  %v41 = vld [vmem:[%s0 + $0x10] sm:$0xff]
  %v42 = vld [vmem:[%s0 + $0x18] sm:$0xff]
  %vm43 = vcmask 261120
  %v45 = vsel %vm43, %v32, 0
  %v48 = vsel %vm43, %v33, 0
  %v51 = vsel %vm43, %v34, 0
  %v54 = vsel %vm43, %v35, 0
  %v57 = vsel %vm43, %v36, 0
  %v60 = vsel %vm43, %v37, 0
  %v63 = vsel %vm43, %v38, 0
  %65 = vmatprep.subr.mxu0 0.0
  %66 = vmatpush1.msra.mxu0 %v39
  %67 = vmatprep.subr.mxu0 0.0
  %68 = vmatpush1.msra.mxu0 %v40
  %69 = vmatprep.subr.mxu0 0.0
  %70 = vmatpush1.msra.mxu0 %v41
  %71 = vmatprep.subr.mxu0 0.0
  %72 = vmatpush1.msra.mxu0 %v42
  %73 = vmatprep.subr.mxu0 0.0
  %74 = vmatpush1.msra.mxu0 0.0
  %75 = vmatprep.subr.mxu0 0.0
  %76 = vmatpush1.msra.mxu0 0.0
  %77 = vmatprep.subr.mxu0 0.0
  %78 = vmatpush1.msra.mxu0 0.0
  %79 = vmatprep.subr.mxu0 0.0
  %80 = vmatpush1.msra.mxu0 0.0
  %81 = vmatprep.subr.mxu0 0.0
  %82 = vmatpush1.msra.mxu0 0.0
  %83 = vmatprep.subr.mxu0 0.0
  %84 = vmatpush1.msra.mxu0 0.0
  %85 = vmatprep.subr.mxu0 0.0
  %86 = vmatpush1.msra.mxu0 0.0
  %87 = vmatprep.subr.mxu0 0.0
  %88 = vmatpush1.msra.mxu0 0.0
  %89 = vmatprep.subr.mxu0 0.0
  %90 = vmatpush1.msra.mxu0 0.0
  %91 = vmatprep.subr.mxu0 0.0
  %92 = vmatpush1.msra.mxu0 0.0
  %93 = vmatprep.subr.mxu0 0.0
  %94 = vmatpush1.msra.mxu0 0.0
  %95 = vmatprep.subr.mxu0 0.0
  %96 = vmatpush1.msra.mxu0 0.0
  %97 = vmatprep.subr.mxu0 0.0
  %98 = vmatpush1.msra.mxu0 0.0
  %99 = vmatprep.subr.mxu0 0.0
  %100 = vmatpush1.msra.mxu0 0.0
  %101 = vmatprep.subr.mxu0 0.0
  %102 = vmatpush1.msra.mxu0 0.0
  %103 = vmatprep.subr.mxu0 0.0
  %104 = vmatpush1.msra.mxu0 0.0
  %105 = vmatprep.subr.mxu0 0.0
  %106 = vmatpush1.msra.mxu0 0.0
  %107 = vmatprep.subr.mxu0 0.0
  %108 = vmatpush1.msra.mxu0 0.0
  %109 = vmatprep.subr.mxu0 0.0
  %110 = vmatpush1.msra.mxu0 0.0
  %111 = vmatprep.subr.mxu0 0.0
  %112 = vmatpush1.msra.mxu0 0.0
  %113 = vmatprep.subr.mxu0 0.0
  %114 = vmatpush1.msra.mxu0 0.0
  %115 = vmatprep.subr.mxu0 0.0
  %116 = vmatpush1.msra.mxu0 0.0
  %117 = vmatprep.subr.mxu0 0.0
  %118 = vmatpush1.msra.mxu0 0.0
  %119 = vmatprep.subr.mxu0 0.0
  %120 = vmatpush1.msra.mxu0 0.0
  %121 = vmatprep.subr.mxu0 0.0
  %122 = vmatpush1.msra.mxu0 0.0
  %123 = vmatprep.subr.mxu0 0.0
  %124 = vmatpush1.msra.mxu0 0.0
  %125 = vmatprep.subr.mxu0 0.0
  %126 = vmatpush1.msra.mxu0 0.0
  %127 = vmatprep.subr.mxu0 0.0
  %128 = vmatpush1.msra.mxu0 0.0
  %129 = vmatprep.mubr.f32.mxu0 0.0
  %130 = vmatmul.mubr.f32.gmra.mrb[0].mxu0 %v45
  %v131 = vpop.f32.mrb[0].mxu0
  %v132 = vadd.f32 0.0, %v131
  %v133 = vpop.f32.mrb[0].mxu0
  %134 = vmatprep.mubr.f32.mxu0 0.0
  %135 = vmatmul.mubr.f32.gmra.mrb[0].mxu0 %v48
  %v136 = vpop.f32.mrb[0].mxu0
  %v137 = vadd.f32 0.0, %v136
  %v138 = vpop.f32.mrb[0].mxu0
  %139 = vmatprep.mubr.f32.mxu0 0.0
  %140 = vmatmul.mubr.f32.gmra.mrb[0].mxu0 %v51
  %v141 = vpop.f32.mrb[0].mxu0
  %v142 = vadd.f32 0.0, %v141
  %v143 = vpop.f32.mrb[0].mxu0
  %144 = vmatprep.mubr.f32.mxu0 0.0
  %145 = vmatmul.mubr.f32.gmra.mrb[0].mxu0 %v54
  %v146 = vpop.f32.mrb[0].mxu0
  %v147 = vadd.f32 0.0, %v146
  %v148 = vpop.f32.mrb[0].mxu0
  %149 = vmatprep.mubr.f32.mxu0 0.0
  %150 = vmatmul.mubr.f32.gmra.mrb[0].mxu0 %v57
  %v151 = vpop.f32.mrb[0].mxu0
  %v152 = vadd.f32 0.0, %v151
  %v153 = vpop.f32.mrb[0].mxu0
  %154 = vmatprep.mubr.f32.mxu0 0.0
  %155 = vmatmul.mubr.f32.gmra.mrb[0].mxu0 %v60
  %v156 = vpop.f32.mrb[0].mxu0
  %v157 = vadd.f32 0.0, %v156
  %v158 = vpop.f32.mrb[0].mxu0
  %159 = vmatprep.mubr.f32.mxu0 0.0
  %160 = vmatmul.mubr.f32.gmra.mrb[0].mxu0 %v63
  %v161 = vpop.f32.mrb[0].mxu0
  %v162 = vadd.f32 0.0, %v161
  %v163 = vpop.f32.mrb[0].mxu0
  %164 = vdwg.mxu0
  %v165 = vld [vmem:[%s3] sm:$0xff]
  %v166 = vld [vmem:[%s3 + $0x8] sm:$0xff]
  %v167 = vld [vmem:[%s3 + $0x10] sm:$0xff]
  %v168 = vld [vmem:[%s3 + $0x18] sm:$0xff]
  %v169 = vld [vmem:[%s4] sm:$0x1]
  %v171 = vlaneseq
  %v172 = vshrl.u32 %v171, 7
  %v173 = vsub.s32 0, %v172
  %v174 = vrot.slane %v169, %v173
  %v177 = vsel %vm43, %v132, 0
  %v180 = vsel %vm43, %v137, 0
  %v183 = vsel %vm43, %v142, 0
  %v186 = vsel %vm43, %v147, 0
  %v189 = vsel %vm43, %v152, 0
  %v192 = vsel %vm43, %v157, 0
  %v195 = vsel %vm43, %v162, 0
  %197 = vmatprep.subr.mxu0 0.0
  %198 = vmatpush1.msra.mxu0 %v165
  %199 = vmatprep.subr.mxu0 0.0
  %200 = vmatpush1.msra.mxu0 %v166
  %201 = vmatprep.subr.mxu0 0.0
  %202 = vmatpush1.msra.mxu0 %v167
  %203 = vmatprep.subr.mxu0 0.0
  %204 = vmatpush1.msra.mxu0 %v168
  %205 = vmatprep.subr.mxu0 0.0
  %206 = vmatpush1.msra.mxu0 0.0
  %207 = vmatprep.subr.mxu0 0.0
  %208 = vmatpush1.msra.mxu0 0.0
  %209 = vmatprep.subr.mxu0 0.0
  %210 = vmatpush1.msra.mxu0 0.0
  %211 = vmatprep.subr.mxu0 0.0
  %212 = vmatpush1.msra.mxu0 0.0
  %213 = vmatprep.subr.mxu0 0.0
  %214 = vmatpush1.msra.mxu0 0.0
  %215 = vmatprep.subr.mxu0 0.0
  %216 = vmatpush1.msra.mxu0 0.0
  %217 = vmatprep.subr.mxu0 0.0
  %218 = vmatpush1.msra.mxu0 0.0
  %219 = vmatprep.subr.mxu0 0.0
  %220 = vmatpush1.msra.mxu0 0.0
  %221 = vmatprep.subr.mxu0 0.0
  %222 = vmatpush1.msra.mxu0 0.0
  %223 = vmatprep.subr.mxu0 0.0
  %224 = vmatpush1.msra.mxu0 0.0
  %225 = vmatprep.subr.mxu0 0.0
  %226 = vmatpush1.msra.mxu0 0.0
  %227 = vmatprep.subr.mxu0 0.0
  %228 = vmatpush1.msra.mxu0 0.0
  %229 = vmatprep.subr.mxu0 0.0
  %230 = vmatpush1.msra.mxu0 0.0
  %231 = vmatprep.subr.mxu0 0.0
  %232 = vmatpush1.msra.mxu0 0.0
  %233 = vmatprep.subr.mxu0 0.0
  %234 = vmatpush1.msra.mxu0 0.0
  %235 = vmatprep.subr.mxu0 0.0
  %236 = vmatpush1.msra.mxu0 0.0
  %237 = vmatprep.subr.mxu0 0.0
  %238 = vmatpush1.msra.mxu0 0.0
  %239 = vmatprep.subr.mxu0 0.0
  %240 = vmatpush1.msra.mxu0 0.0
  %241 = vmatprep.subr.mxu0 0.0
  %242 = vmatpush1.msra.mxu0 0.0
  %243 = vmatprep.subr.mxu0 0.0
  %244 = vmatpush1.msra.mxu0 0.0
  %245 = vmatprep.subr.mxu0 0.0
  %246 = vmatpush1.msra.mxu0 0.0
  %247 = vmatprep.subr.mxu0 0.0
  %248 = vmatpush1.msra.mxu0 0.0
  %249 = vmatprep.subr.mxu0 0.0
  %250 = vmatpush1.msra.mxu0 0.0
  %251 = vmatprep.subr.mxu0 0.0
  %252 = vmatpush1.msra.mxu0 0.0
  %253 = vmatprep.subr.mxu0 0.0
  %254 = vmatpush1.msra.mxu0 0.0
  %255 = vmatprep.subr.mxu0 0.0
  %256 = vmatpush1.msra.mxu0 0.0
  %257 = vmatprep.subr.mxu0 0.0
  %258 = vmatpush1.msra.mxu0 0.0
  %259 = vmatprep.subr.mxu0 0.0
  %260 = vmatpush1.msra.mxu0 0.0
  %261 = vmatprep.mubr.f32.mxu0 0.0
  %262 = vmatmul.mubr.f32.gmra.mrb[0].mxu0 %v177
  %v263 = vpop.f32.mrb[0].mxu0
  %v264 = vadd.f32 %v174, %v263
  %v265 = vpop.f32.mrb[0].mxu0
  %266 = vmatprep.mubr.f32.mxu0 0.0
  %267 = vmatmul.mubr.f32.gmra.mrb[0].mxu0 %v180
  %v268 = vpop.f32.mrb[0].mxu0
  %v269 = vadd.f32 %v174, %v268
  %v270 = vpop.f32.mrb[0].mxu0
  %271 = vmatprep.mubr.f32.mxu0 0.0
  %272 = vmatmul.mubr.f32.gmra.mrb[0].mxu0 %v183
  %v273 = vpop.f32.mrb[0].mxu0
  %v274 = vadd.f32 %v174, %v273
  %v275 = vpop.f32.mrb[0].mxu0
  %276 = vmatprep.mubr.f32.mxu0 0.0
  %277 = vmatmul.mubr.f32.gmra.mrb[0].mxu0 %v186
  %v278 = vpop.f32.mrb[0].mxu0
  %v279 = vadd.f32 %v174, %v278
  %v280 = vpop.f32.mrb[0].mxu0
  %281 = vmatprep.mubr.f32.mxu0 0.0
  %282 = vmatmul.mubr.f32.gmra.mrb[0].mxu0 %v189
  %v283 = vpop.f32.mrb[0].mxu0
  %v284 = vadd.f32 %v174, %v283
  %v285 = vpop.f32.mrb[0].mxu0
  %286 = vmatprep.mubr.f32.mxu0 0.0
  %287 = vmatmul.mubr.f32.gmra.mrb[0].mxu0 %v192
  %v288 = vpop.f32.mrb[0].mxu0
  %v289 = vadd.f32 %v174, %v288
  %v290 = vpop.f32.mrb[0].mxu0
  %291 = vmatprep.mubr.f32.mxu0 0.0
  %292 = vmatmul.mubr.f32.gmra.mrb[0].mxu0 %v195
  %v293 = vpop.f32.mrb[0].mxu0
  %v294 = vadd.f32 %v174, %v293
  %v295 = vpop.f32.mrb[0].mxu0
  %296 = vdwg.mxu0
  %v297 = vld [vmem:[%s2] sm:$0xff]
  %v298 = vld [vmem:[%s2 + $0x8] sm:$0xff]
  %v299 = vld [vmem:[%s2 + $0x10] sm:$0xff]
  %v300 = vld [vmem:[%s2 + $0x18] sm:$0xff]
  %v301 = vld [vmem:[%s2 + $0x20] sm:$0xff]
  %v302 = vld [vmem:[%s2 + $0x28] sm:$0xff]
  %v303 = vld [vmem:[%s2 + $0x30] sm:$0xf]
  %v304 = vadd.f32 %v264, %v297
  %v305 = vadd.f32 %v269, %v298
  %v306 = vadd.f32 %v274, %v299
  %v307 = vadd.f32 %v279, %v300
  %v308 = vadd.f32 %v284, %v301
  %v309 = vadd.f32 %v289, %v302
  %v310 = vadd.f32 %v294, %v303
  %v311 = vtanh.pop %v304
  %v312 = vtanh.pop %v305
  %v313 = vtanh.pop %v306
  %v314 = vtanh.pop %v307
  %v315 = vtanh.pop %v308
  %v316 = vtanh.pop %v309
  %v317 = vtanh.pop %v310
  %v318 = vld [vmem:[%s5] sm:$0xff]
  %v319 = vld [vmem:[%s5 + $0x8] sm:$0xff]
  %v320 = vld [vmem:[%s5 + $0x10] sm:$0xff]
  %v321 = vld [vmem:[%s5 + $0x18] sm:$0xff]
  %v322 = vld [vmem:[%s6] sm:$0x1]
  %v324 = vlaneseq
  %v325 = vshrl.u32 %v324, 7
  %v326 = vsub.s32 0, %v325
  %v327 = vrot.slane %v322, %v326
  %v330 = vsel %vm43, %v311, 0
  %v333 = vsel %vm43, %v312, 0
  %v336 = vsel %vm43, %v313, 0
  %v339 = vsel %vm43, %v314, 0
  %v342 = vsel %vm43, %v315, 0
  %v345 = vsel %vm43, %v316, 0
  %v348 = vsel %vm43, %v317, 0
  %350 = vmatprep.subr.mxu0 0.0
  %351 = vmatpush1.msra.mxu0 %v318
  %352 = vmatprep.subr.mxu0 0.0
  %353 = vmatpush1.msra.mxu0 %v319
  %354 = vmatprep.subr.mxu0 0.0
  %355 = vmatpush1.msra.mxu0 %v320
  %356 = vmatprep.subr.mxu0 0.0
  %357 = vmatpush1.msra.mxu0 %v321
  %358 = vmatprep.subr.mxu0 0.0
  %359 = vmatpush1.msra.mxu0 0.0
  %360 = vmatprep.subr.mxu0 0.0
  %361 = vmatpush1.msra.mxu0 0.0
  %362 = vmatprep.subr.mxu0 0.0
  %363 = vmatpush1.msra.mxu0 0.0
  %364 = vmatprep.subr.mxu0 0.0
  %365 = vmatpush1.msra.mxu0 0.0
  %366 = vmatprep.subr.mxu0 0.0
  %367 = vmatpush1.msra.mxu0 0.0
  %368 = vmatprep.subr.mxu0 0.0
  %369 = vmatpush1.msra.mxu0 0.0
  %370 = vmatprep.subr.mxu0 0.0
  %371 = vmatpush1.msra.mxu0 0.0
  %372 = vmatprep.subr.mxu0 0.0
  %373 = vmatpush1.msra.mxu0 0.0
  %374 = vmatprep.subr.mxu0 0.0
  %375 = vmatpush1.msra.mxu0 0.0
  %376 = vmatprep.subr.mxu0 0.0
  %377 = vmatpush1.msra.mxu0 0.0
  %378 = vmatprep.subr.mxu0 0.0
  %379 = vmatpush1.msra.mxu0 0.0
  %380 = vmatprep.subr.mxu0 0.0
  %381 = vmatpush1.msra.mxu0 0.0
  %382 = vmatprep.subr.mxu0 0.0
  %383 = vmatpush1.msra.mxu0 0.0
  %384 = vmatprep.subr.mxu0 0.0
  %385 = vmatpush1.msra.mxu0 0.0
  %386 = vmatprep.subr.mxu0 0.0
  %387 = vmatpush1.msra.mxu0 0.0
  %388 = vmatprep.subr.mxu0 0.0
  %389 = vmatpush1.msra.mxu0 0.0
  %390 = vmatprep.subr.mxu0 0.0
  %391 = vmatpush1.msra.mxu0 0.0
  %392 = vmatprep.subr.mxu0 0.0
  %393 = vmatpush1.msra.mxu0 0.0
  %394 = vmatprep.subr.mxu0 0.0
  %395 = vmatpush1.msra.mxu0 0.0
  %396 = vmatprep.subr.mxu0 0.0
  %397 = vmatpush1.msra.mxu0 0.0
  %398 = vmatprep.subr.mxu0 0.0
  %399 = vmatpush1.msra.mxu0 0.0
  %400 = vmatprep.subr.mxu0 0.0
  %401 = vmatpush1.msra.mxu0 0.0
  %402 = vmatprep.subr.mxu0 0.0
  %403 = vmatpush1.msra.mxu0 0.0
  %404 = vmatprep.subr.mxu0 0.0
  %405 = vmatpush1.msra.mxu0 0.0
  %406 = vmatprep.subr.mxu0 0.0
  %407 = vmatpush1.msra.mxu0 0.0
  %408 = vmatprep.subr.mxu0 0.0
  %409 = vmatpush1.msra.mxu0 0.0
  %410 = vmatprep.subr.mxu0 0.0
  %411 = vmatpush1.msra.mxu0 0.0
  %412 = vmatprep.subr.mxu0 0.0
  %413 = vmatpush1.msra.mxu0 0.0
  %414 = vmatprep.mubr.f32.mxu0 0.0
  %415 = vmatmul.mubr.f32.gmra.mrb[0].mxu0 %v330
  %v416 = vpop.f32.mrb[0].mxu0
  %v417 = vadd.f32 %v327, %v416
  %v418 = vpop.f32.mrb[0].mxu0
  %419 = vmatprep.mubr.f32.mxu0 0.0
  %420 = vmatmul.mubr.f32.gmra.mrb[0].mxu0 %v333
  %v421 = vpop.f32.mrb[0].mxu0
  %v422 = vadd.f32 %v327, %v421
  %v423 = vpop.f32.mrb[0].mxu0
  %424 = vmatprep.mubr.f32.mxu0 0.0
  %425 = vmatmul.mubr.f32.gmra.mrb[0].mxu0 %v336
  %v426 = vpop.f32.mrb[0].mxu0
  %v427 = vadd.f32 %v327, %v426
  %v428 = vpop.f32.mrb[0].mxu0
  %429 = vmatprep.mubr.f32.mxu0 0.0
  %430 = vmatmul.mubr.f32.gmra.mrb[0].mxu0 %v339
  %v431 = vpop.f32.mrb[0].mxu0
  %v432 = vadd.f32 %v327, %v431
  %v433 = vpop.f32.mrb[0].mxu0
  %434 = vmatprep.mubr.f32.mxu0 0.0
  %435 = vmatmul.mubr.f32.gmra.mrb[0].mxu0 %v342
  %v436 = vpop.f32.mrb[0].mxu0
  %v437 = vadd.f32 %v327, %v436
  %v438 = vpop.f32.mrb[0].mxu0
  %439 = vmatprep.mubr.f32.mxu0 0.0
  %440 = vmatmul.mubr.f32.gmra.mrb[0].mxu0 %v345
  %v441 = vpop.f32.mrb[0].mxu0
  %v442 = vadd.f32 %v327, %v441
  %v443 = vpop.f32.mrb[0].mxu0
  %444 = vmatprep.mubr.f32.mxu0 0.0
  %445 = vmatmul.mubr.f32.gmra.mrb[0].mxu0 %v348
  %v446 = vpop.f32.mrb[0].mxu0
  %v447 = vadd.f32 %v327, %v446
  %v448 = vpop.f32.mrb[0].mxu0
  %449 = vdwg.mxu0
  %v450 = vsel %vm43, %v417, -inf
  %451 = vmax.xlane.f32.xlu0 %v450
  %v452 = vpop.xlane.xlu0 %451
  %v453 = vsel %vm43, %v422, -inf
  %454 = vmax.xlane.f32.xlu0 %v453
  %v455 = vpop.xlane.xlu0 %454
  %v456 = vsel %vm43, %v427, -inf
  %457 = vmax.xlane.f32.xlu0 %v456
  %v458 = vpop.xlane.xlu0 %457
  %v459 = vsel %vm43, %v432, -inf
  %460 = vmax.xlane.f32.xlu0 %v459
  %v461 = vpop.xlane.xlu0 %460
  %v462 = vsel %vm43, %v437, -inf
  %463 = vmax.xlane.f32.xlu0 %v462
  %v464 = vpop.xlane.xlu0 %463
  %v465 = vsel %vm43, %v442, -inf
  %466 = vmax.xlane.f32.xlu0 %v465
  %v467 = vpop.xlane.xlu0 %466
  %vm468 = vcmask 257024
  %v469 = vsel %vm468, %v447, -inf
  %470 = vmax.xlane.f32.xlu0 %v469
  %v471 = vpop.xlane.xlu0 %470
  %v472 = vsub.f32 %v417, %v452
  %v473 = vsub.f32 %v422, %v455
  %v474 = vsub.f32 %v427, %v458
  %v475 = vsub.f32 %v432, %v461
  %v476 = vsub.f32 %v437, %v464
  %v477 = vsub.f32 %v442, %v467
  %v478 = vsub.f32 %v447, %v471
  %v479 = vmul.f32 %v472, 1.442695
  %v480 = vpow.pop %v479
  %v481 = vmul.f32 %v473, 1.442695
  %v482 = vpow.pop %v481
  %v483 = vmul.f32 %v474, 1.442695
  %v484 = vpow.pop %v483
  %v485 = vmul.f32 %v475, 1.442695
  %v486 = vpow.pop %v485
  %v487 = vmul.f32 %v476, 1.442695
  %v488 = vpow.pop %v487
  %v489 = vmul.f32 %v477, 1.442695
  %v490 = vpow.pop %v489
  %v491 = vmul.f32 %v478, 1.442695
  %v492 = vpow.pop %v491
  %v493 = vsel %vm43, %v480, 0.0
  %494 = vadd.xlane.f32.xlu0 %v493
  %v495 = vpop.xlane.xlu0 %494
  %v496 = vsel %vm43, %v482, 0.0
  %497 = vadd.xlane.f32.xlu0 %v496
  %v498 = vpop.xlane.xlu0 %497
  %v499 = vsel %vm43, %v484, 0.0
  %500 = vadd.xlane.f32.xlu0 %v499
  %v501 = vpop.xlane.xlu0 %500
  %v502 = vsel %vm43, %v486, 0.0
  %503 = vadd.xlane.f32.xlu0 %v502
  %v504 = vpop.xlane.xlu0 %503
  %v505 = vsel %vm43, %v488, 0.0
  %506 = vadd.xlane.f32.xlu0 %v505
  %v507 = vpop.xlane.xlu0 %506
  %v508 = vsel %vm43, %v490, 0.0
  %509 = vadd.xlane.f32.xlu0 %v508
  %v510 = vpop.xlane.xlu0 %509
  %v511 = vsel %vm468, %v492, 0.0
  %512 = vadd.xlane.f32.xlu0 %v511
  %v513 = vpop.xlane.xlu0 %512
  %v514 = vrcp.pop %v495
  %v515 = vrcp.pop %v498
  %v516 = vrcp.pop %v501
  %v517 = vrcp.pop %v504
  %v518 = vrcp.pop %v507
  %v519 = vrcp.pop %v510
  %v520 = vrcp.pop %v513
  %v521 = vmul.f32 %v480, %v514
  %v522 = vmul.f32 %v482, %v515
  %v523 = vmul.f32 %v484, %v516
  %v524 = vmul.f32 %v486, %v517
  %v525 = vmul.f32 %v488, %v518
  %v526 = vmul.f32 %v490, %v519
  %v527 = vmul.f32 %v492, %v520
  %v528 = vmul.f32 %v132, %v521
  %v529 = vmul.f32 %v137, %v522
  %v530 = vmul.f32 %v142, %v523
  %v531 = vmul.f32 %v147, %v524
  %v532 = vmul.f32 %v152, %v525
  %v533 = vmul.f32 %v157, %v526
  %v534 = vmul.f32 %v162, %v527
  %v535 = vld [vmem:[%s7] sm:$0xff]
  %v536 = vld [vmem:[%s7 + $0x8] sm:$0xff]
  %v537 = vld [vmem:[%s7 + $0x10] sm:$0xff]
  %v538 = vld [vmem:[%s7 + $0x18] sm:$0xff]
  %v539 = vld [vmem:[%s8] sm:$0x1]
  %v541 = vlaneseq
  %v542 = vshrl.u32 %v541, 7
  %v543 = vsub.s32 0, %v542
  %v544 = vrot.slane %v539, %v543
  %v547 = vsel %vm43, %v528, 0
  %v550 = vsel %vm43, %v529, 0
  %v553 = vsel %vm43, %v530, 0
  %v556 = vsel %vm43, %v531, 0
  %v559 = vsel %vm43, %v532, 0
  %v562 = vsel %vm43, %v533, 0
  %v565 = vsel %vm43, %v534, 0
  %567 = vmatprep.subr.mxu0 0.0
  %568 = vmatpush1.msra.mxu0 %v535
  %569 = vmatprep.subr.mxu0 0.0
  %570 = vmatpush1.msra.mxu0 %v536
  %571 = vmatprep.subr.mxu0 0.0
  %572 = vmatpush1.msra.mxu0 %v537
  %573 = vmatprep.subr.mxu0 0.0
  %574 = vmatpush1.msra.mxu0 %v538
  %575 = vmatprep.subr.mxu0 0.0
  %576 = vmatpush1.msra.mxu0 0.0
  %577 = vmatprep.subr.mxu0 0.0
  %578 = vmatpush1.msra.mxu0 0.0
  %579 = vmatprep.subr.mxu0 0.0
  %580 = vmatpush1.msra.mxu0 0.0
  %581 = vmatprep.subr.mxu0 0.0
  %582 = vmatpush1.msra.mxu0 0.0
  %583 = vmatprep.subr.mxu0 0.0
  %584 = vmatpush1.msra.mxu0 0.0
  %585 = vmatprep.subr.mxu0 0.0
  %586 = vmatpush1.msra.mxu0 0.0
  %587 = vmatprep.subr.mxu0 0.0
  %588 = vmatpush1.msra.mxu0 0.0
  %589 = vmatprep.subr.mxu0 0.0
  %590 = vmatpush1.msra.mxu0 0.0
  %591 = vmatprep.subr.mxu0 0.0
  %592 = vmatpush1.msra.mxu0 0.0
  %593 = vmatprep.subr.mxu0 0.0
  %594 = vmatpush1.msra.mxu0 0.0
  %595 = vmatprep.subr.mxu0 0.0
  %596 = vmatpush1.msra.mxu0 0.0
  %597 = vmatprep.subr.mxu0 0.0
  %598 = vmatpush1.msra.mxu0 0.0
  %599 = vmatprep.subr.mxu0 0.0
  %600 = vmatpush1.msra.mxu0 0.0
  %601 = vmatprep.subr.mxu0 0.0
  %602 = vmatpush1.msra.mxu0 0.0
  %603 = vmatprep.subr.mxu0 0.0
  %604 = vmatpush1.msra.mxu0 0.0
  %605 = vmatprep.subr.mxu0 0.0
  %606 = vmatpush1.msra.mxu0 0.0
  %607 = vmatprep.subr.mxu0 0.0
  %608 = vmatpush1.msra.mxu0 0.0
  %609 = vmatprep.subr.mxu0 0.0
  %610 = vmatpush1.msra.mxu0 0.0
  %611 = vmatprep.subr.mxu0 0.0
  %612 = vmatpush1.msra.mxu0 0.0
  %613 = vmatprep.subr.mxu0 0.0
  %614 = vmatpush1.msra.mxu0 0.0
  %615 = vmatprep.subr.mxu0 0.0
  %616 = vmatpush1.msra.mxu0 0.0
  %617 = vmatprep.subr.mxu0 0.0
  %618 = vmatpush1.msra.mxu0 0.0
  %619 = vmatprep.subr.mxu0 0.0
  %620 = vmatpush1.msra.mxu0 0.0
  %621 = vmatprep.subr.mxu0 0.0
  %622 = vmatpush1.msra.mxu0 0.0
  %623 = vmatprep.subr.mxu0 0.0
  %624 = vmatpush1.msra.mxu0 0.0
  %625 = vmatprep.subr.mxu0 0.0
  %626 = vmatpush1.msra.mxu0 0.0
  %627 = vmatprep.subr.mxu0 0.0
  %628 = vmatpush1.msra.mxu0 0.0
  %629 = vmatprep.subr.mxu0 0.0
  %630 = vmatpush1.msra.mxu0 0.0
  %631 = vmatprep.mubr.f32.mxu0 0.0
  %632 = vmatmul.mubr.f32.gmra.mrb[0].mxu0 %v547
  %v633 = vpop.f32.mrb[0].mxu0
  %v634 = vadd.f32 %v544, %v633
  %v635 = vpop.f32.mrb[0].mxu0
  %636 = vmatprep.mubr.f32.mxu0 0.0
  %637 = vmatmul.mubr.f32.gmra.mrb[0].mxu0 %v550
  %v638 = vpop.f32.mrb[0].mxu0
  %v639 = vadd.f32 %v544, %v638
  %v640 = vpop.f32.mrb[0].mxu0
  %641 = vmatprep.mubr.f32.mxu0 0.0
  %642 = vmatmul.mubr.f32.gmra.mrb[0].mxu0 %v553
  %v643 = vpop.f32.mrb[0].mxu0
  %v644 = vadd.f32 %v544, %v643
  %v645 = vpop.f32.mrb[0].mxu0
  %646 = vmatprep.mubr.f32.mxu0 0.0
  %647 = vmatmul.mubr.f32.gmra.mrb[0].mxu0 %v556
  %v648 = vpop.f32.mrb[0].mxu0
  %v649 = vadd.f32 %v544, %v648
  %v650 = vpop.f32.mrb[0].mxu0
  %651 = vmatprep.mubr.f32.mxu0 0.0
  %652 = vmatmul.mubr.f32.gmra.mrb[0].mxu0 %v559
  %v653 = vpop.f32.mrb[0].mxu0
  %v654 = vadd.f32 %v544, %v653
  %v655 = vpop.f32.mrb[0].mxu0
  %656 = vmatprep.mubr.f32.mxu0 0.0
  %657 = vmatmul.mubr.f32.gmra.mrb[0].mxu0 %v562
  %v658 = vpop.f32.mrb[0].mxu0
  %v659 = vadd.f32 %v544, %v658
  %v660 = vpop.f32.mrb[0].mxu0
  %661 = vmatprep.mubr.f32.mxu0 0.0
  %662 = vmatmul.mubr.f32.gmra.mrb[0].mxu0 %v565
  %v663 = vpop.f32.mrb[0].mxu0
  %v664 = vadd.f32 %v544, %v663
  %v665 = vpop.f32.mrb[0].mxu0
  %666 = vdwg.mxu0
  %667 = vst [vmem:[%s9] sm:$0xff] %v634
  %668 = vst [vmem:[%s9 + $0x8] sm:$0xff] %v639
  %669 = vst [vmem:[%s9 + $0x10] sm:$0xff] %v644
  %670 = vst [vmem:[%s9 + $0x18] sm:$0xff] %v649
  %671 = vst [vmem:[%s9 + $0x20] sm:$0xff] %v654
  %672 = vst [vmem:[%s9 + $0x28] sm:$0xff] %v659
  %673 = vst [vmem:[%s9 + $0x30] sm:$0xf] %v664
  // Predicated region
  $region38: #{ote_decoder_forward.1} parent=0 // pred_check
    _
  $region39: #{ote_decoder_forward.1} parent=0 // pred_check_branch
    %675 = sbr.rel (0) target = $region41
  $region40: #{ote_decoder_forward.1} parent=0 // pred_region
    _
  $region41: #{ote_decoder_forward.1} parent=0 // pred_fallthru
    _
  // Predicated region
  $region42: #{ote_decoder_forward.1} parent=0 // pred_check
    _
  $region43: #{ote_decoder_forward.1} parent=0 // pred_check_branch
    %677 = sbr.rel (0) target = $region45
  $region44: #{ote_decoder_forward.1} parent=0 // pred_region
    _
  $region45: #{ote_decoder_forward.1} parent=0 // pred_fallthru
    _

</llo_original>
